<compile_context>
chip_gen: v7x
topology: tpu7x:2x2x1
jax: 0.10.0
libtpu: 0.0.40
codegen_flags: <defaults>
</compile_context>

<pallas_src>
import functools

import jax
import jax.numpy as jnp
import numpy as np
from jax.experimental import pallas as pl
from jax.experimental.pallas import tpu as pltpu

LANES = 128  # lane width of a vreg; all packed weight blocks are 128-lane wide


# ----------------------------- Pallas kernel --------------------------------
def decoder_kernel(enc_ref, h0_ref, w_ref, emb_ref, out_ref, h_scratch, *, dims):
    B, S, E, D, M, O, A, KR = dims
    f32 = jnp.float32
    t = pl.program_id(0)

    # Carry the GRU hidden state across decode steps in VMEM scratch.
    @pl.when(t == 0)
    def _():
        h_scratch[...] = h0_ref[...]

    enc = enc_ref[...]                # [B, S, E]  (VMEM-resident across steps)
    hid = h_scratch[...]              # [B, D]
    emb = emb_ref[0]                  # [B, M]     (per-step block)

    # ---- static, lane-aligned weight / bias views (slab is VMEM-resident) ----
    W_H   = w_ref[0:D,         0 * LANES:1 * LANES]   # [D,128]  [wa_h | whh.T]
    W_ENC = w_ref[0:E,         1 * LANES:2 * LANES]   # [E,128]  wa_e.T (0-pad)
    W_GI  = w_ref[0:M + E,     2 * LANES:3 * LANES]   # [M+E,128] gru_w_ih.T
    W_FC  = w_ref[0:D + E + M, 3 * LANES:4 * LANES]   # [D+E+M,128] fc_w.T

    b_attn = w_ref[KR:KR + 1,     0 * LANES:1 * LANES]   # [1,128]
    b_ih   = w_ref[KR:KR + 1,     1 * LANES:2 * LANES]   # [1,128]
    b_hh   = w_ref[KR:KR + 1,     2 * LANES:3 * LANES]   # [1,128]
    b_fc   = w_ref[KR:KR + 1,     3 * LANES:4 * LANES]   # [1,128]
    v_attn = w_ref[KR + 1:KR + 2, 0 * LANES:1 * LANES]   # [1,128]

    # ---- fused hidden projection: [attn hidden-proj | GRU hh gates] ----
    h_out = jnp.dot(hid, W_H, preferred_element_type=f32)          # [B,128]
    hid_proj = h_out[:, :A]                                         # [B,A]
    gh = h_out[:, A:A + 3 * D] + b_hh[:, :3 * D]                    # [B,3D]

    # ---- attention: tanh(W_a [h; enc] + b_a) . v, softmax over src positions
    enc_proj = jnp.dot(enc.reshape(B * S, E), W_ENC,
                       preferred_element_type=f32)                  # [B*S,128]
    enc_proj = enc_proj.reshape(B, S, LANES)[:, :, :A]               # [B,S,A]
    energy = jnp.tanh(enc_proj + hid_proj[:, None, :] + b_attn[:, None, :A])
    scores = jnp.sum(energy * v_attn[:, None, :A], axis=-1)          # [B,S]
    scores = scores - jnp.max(scores, axis=-1, keepdims=True)
    ex = jnp.exp(scores)
    denom = jnp.sum(ex, axis=-1, keepdims=True)
    attn = ex * pl.reciprocal(denom, approx=False)                   # [B,S]

    # ---- weighted context: bmm(a[B,1,S], enc[B,S,E]) -> [B,E] ----
    weighted = jnp.sum(attn[:, :, None] * enc, axis=1)               # [B,E]

    # ---- GRU cell (single step, PyTorch gate order [r, z, n]) ----
    gi = jnp.dot(jnp.concatenate([emb, weighted], axis=1), W_GI,
                 preferred_element_type=f32) + b_ih                  # [B,128]
    r = jax.nn.sigmoid(gi[:, 0:D] + gh[:, 0:D])
    z = jax.nn.sigmoid(gi[:, D:2 * D] + gh[:, D:2 * D])
    n = jnp.tanh(gi[:, 2 * D:3 * D] + r * gh[:, 2 * D:3 * D])
    h_new = (1.0 - z) * n + z * hid                                  # [B,D]

    # ---- fc_out( cat(output, weighted, embedded) ), K-fused single dot ----
    pred = jnp.dot(jnp.concatenate([h_new, weighted, emb], axis=1), W_FC,
                   preferred_element_type=f32) + b_fc                # [B,128]

    # carry hidden to the next decode step
    h_scratch[...] = h_new

    # ---- single lane-dense output slab: [pred | h_new | attn | 0-pad] ----
    pieces = [pred[:, :O], h_new, attn]
    pad = LANES - (O + D + S)
    if pad > 0:
        pieces.append(jnp.zeros((B, pad), f32))
    out_ref[0] = jnp.concatenate(pieces, axis=1)                     # [B,128]


# -------------------------- weight / bias packing -----------------------------
def _pack_weight_slab(params, D, E, M, A, O):
    """Pack all weights + biases into one [KR+8, 4*128] f32 slab."""
    f32 = jnp.float32
    KR = D + E + M
    slab = jnp.zeros((KR + 8, 4 * LANES), f32)

    wa = params["attn_w"].astype(f32)        # [A, D+E]  (cat order: hidden | enc)
    whh = params["gru_w_hh"].astype(f32)     # [3D, D]
    wih = params["gru_w_ih"].astype(f32)     # [3D, M+E] (rnn input = cat(emb, weighted))
    wfc = params["fc_w"].astype(f32)         # [O, D+E+M] (cat(output, weighted, emb))

    # block 0: W_H = [wa_h (DxA) | whh.T (Dx3D)]
    W_H = jnp.concatenate([wa[:, :D].T, whh.T], axis=1)              # [D, A+3D]
    slab = slab.at[0:D, 0:A + 3 * D].set(W_H)
    # block 1: W_ENC = wa_e.T  [E, A]
    slab = slab.at[0:E, LANES:LANES + A].set(wa[:, D:].T)
    # block 2: W_GI = gru_w_ih.T  [M+E, 3D]
    slab = slab.at[0:M + E, 2 * LANES:2 * LANES + 3 * D].set(wih.T)
    # block 3: W_FC = fc_w.T  [D+E+M, O]
    slab = slab.at[0:KR, 3 * LANES:3 * LANES + O].set(wfc.T)

    # bias / vector rows (folded into the slab)
    slab = slab.at[KR, 0:A].set(params["attn_b"].astype(f32))
    slab = slab.at[KR, LANES:LANES + 3 * D].set(params["gru_b_ih"].astype(f32))
    slab = slab.at[KR, 2 * LANES:2 * LANES + 3 * D].set(params["gru_b_hh"].astype(f32))
    slab = slab.at[KR, 3 * LANES:3 * LANES + O].set(params["fc_b"].astype(f32))
    slab = slab.at[KR + 1, 0:A].set(params["attn_v"].astype(f32))
    return slab


# ------------------------------ JAX wrappers ----------------------------------
def decoder_forward_steps(encoder_outputs, encoder_hidden, target_tokens, params):
    """Teacher-forced multi-step decode in ONE kernel launch.

    target_tokens: [T, B] int tokens.  Returns (preds [T,B,O], hiddens [T,B,D],
    attns [T,B,S]).  Weights stay VMEM-resident across all T steps.
    """
    T, _ = target_tokens.shape
    B, S, E = encoder_outputs.shape
    D = encoder_hidden.shape[1]
    emb_tab = params["embedding"].astype(jnp.float32)
    M = emb_tab.shape[1]
    A = params["attn_b"].shape[0]
    O = params["fc_b"].shape[0]
    KR = D + E + M

    assert D % 8 == 0 and E % 8 == 0 and M % 8 == 0, "row dims must be 8-aligned"
    assert A + 3 * D <= LANES, "fused hid-projection block must fit 128 lanes"
    assert O <= LANES, "fc output must fit 128 lanes"
    assert O + D + S <= LANES, "fused output slab must fit 128 lanes"

    # Embedding lookup (glue) + eval-mode dropout (identity).
    emb_seq = emb_tab[target_tokens]                                  # [T, B, M]
    w_slab = _pack_weight_slab(params, D, E, M, A, O)                 # [KR+8, 512]

    dims = (B, S, E, D, M, O, A, KR)
    kernel = functools.partial(decoder_kernel, dims=dims)

    out = pl.pallas_call(
        kernel,
        out_shape=jax.ShapeDtypeStruct((T, B, LANES), jnp.float32),
        grid_spec=pltpu.PrefetchScalarGridSpec(
            num_scalar_prefetch=0,
            grid=(T,),
            in_specs=[
                pl.BlockSpec((B, S, E), lambda t: (0, 0, 0)),    # resident
                pl.BlockSpec((B, D), lambda t: (0, 0)),          # resident
                pl.BlockSpec(w_slab.shape, lambda t: (0, 0)),    # resident
                pl.BlockSpec((1, B, M), lambda t: (t, 0, 0)),    # per-step
            ],
            out_specs=pl.BlockSpec((1, B, LANES), lambda t: (t, 0, 0)),
            scratch_shapes=[pltpu.VMEM((B, D), jnp.float32)],    # hidden carry
        ),
        compiler_params=pltpu.CompilerParams(
            dimension_semantics=("arbitrary",)),                 # time carries state
    )(encoder_outputs.astype(jnp.float32),
      encoder_hidden.astype(jnp.float32),
      w_slab, emb_seq)

    preds = out[:, :, :O]
    hiddens = out[:, :, O:O + D]
    attns = out[:, :, O + D:O + D + S]
    return preds, hiddens, attns


def decoder_forward(encoder_outputs, encoder_hidden, target_tensor, params):
    """Single decoder step == the PyTorch module's forward (T == 1)."""
    preds, hiddens, attns = decoder_forward_steps(
        encoder_outputs, encoder_hidden, target_tensor[None, :], params)
    return preds[0], hiddens[0], attns[0]


# ---------------------------- pure-JAX reference ------------------------------
def decoder_reference(encoder_outputs, encoder_hidden, target_tensor, params):
    B, S, E = encoder_outputs.shape
    D = encoder_hidden.shape[1]
    emb = params["embedding"][target_tensor]
    # attention
    hid_rep = jnp.broadcast_to(encoder_hidden[:, None, :], (B, S, D))
    cat = jnp.concatenate([hid_rep, encoder_outputs], axis=-1)
    energy = jnp.tanh(cat @ params["attn_w"].T + params["attn_b"])
    scores = (energy @ params["attn_v"][:, None])[..., 0]
    a = jax.nn.softmax(scores, axis=1)
    weighted = jnp.einsum("bs,bse->be", a, encoder_outputs)
    # GRU cell
    x = jnp.concatenate([emb, weighted], axis=1)
    gi = x @ params["gru_w_ih"].T + params["gru_b_ih"]
    gh = encoder_hidden @ params["gru_w_hh"].T + params["gru_b_hh"]
    r = jax.nn.sigmoid(gi[:, :D] + gh[:, :D])
    z = jax.nn.sigmoid(gi[:, D:2 * D] + gh[:, D:2 * D])
    n = jnp.tanh(gi[:, 2 * D:] + r * gh[:, 2 * D:])
    h_new = (1.0 - z) * n + z * encoder_hidden
    pred = jnp.concatenate([h_new, weighted, emb], axis=1) @ params["fc_w"].T + params["fc_b"]
    return pred, h_new, a


# ---------------------------------- main --------------------------------------
if __name__ == "__main__":
    # Small, MXU/VPU-friendly shapes.
    B, S = 8, 8                  # batch, src_len
    E, D, M, O = 32, 32, 16, 64  # encoder_dim, decoder_dim, embedding_dim, output_dim
    A = D                        # attention hidden dim

    key = jax.random.PRNGKey(0)
    ks = jax.random.split(key, 12)
    u = lambda k, shape, s: jax.random.uniform(k, shape, jnp.float32, -s, s)

    params = {
        "embedding": u(ks[0], (O, M), 1.0),
        "attn_w":    u(ks[1], (A, D + E), 1.0 / np.sqrt(D + E)),
        "attn_b":    u(ks[2], (A,), 1.0 / np.sqrt(D + E)),
        "attn_v":    u(ks[3], (A,), 1.0 / np.sqrt(A)),
        "gru_w_ih":  u(ks[4], (3 * D, M + E), 1.0 / np.sqrt(D)),
        "gru_b_ih":  u(ks[5], (3 * D,), 1.0 / np.sqrt(D)),
        "gru_w_hh":  u(ks[6], (3 * D, D), 1.0 / np.sqrt(D)),
        "gru_b_hh":  u(ks[7], (3 * D,), 1.0 / np.sqrt(D)),
        "fc_w":      u(ks[8], (O, D + E + M), 1.0 / np.sqrt(D + E + M)),
        "fc_b":      u(ks[9], (O,), 1.0 / np.sqrt(D + E + M)),
    }

    encoder_outputs = jax.random.normal(ks[10], (B, S, E), jnp.float32)
    encoder_hidden = jax.random.normal(ks[11], (B, D), jnp.float32)
    target_tensor = jax.random.randint(jax.random.PRNGKey(1), (B,), 0, O, jnp.int32)

    # ---- single decoder step (== the PyTorch module's forward) ----
    pred, h_new, attn = decoder_forward(encoder_outputs, encoder_hidden,
                                        target_tensor, params)
    jax.block_until_ready((pred, h_new, attn))

    rp, rh, ra = decoder_reference(encoder_outputs, encoder_hidden,
                                   target_tensor, params)
    np.testing.assert_allclose(np.asarray(pred), np.asarray(rp), rtol=1e-3, atol=1e-3)
    np.testing.assert_allclose(np.asarray(h_new), np.asarray(rh), rtol=1e-3, atol=1e-3)
    np.testing.assert_allclose(np.asarray(attn), np.asarray(ra), rtol=1e-3, atol=1e-3)
    assert pred.shape == (B, O) and h_new.shape == (B, D) and attn.shape == (B, S)

    # ---- teacher-forced multi-step decode: one launch, weights VMEM-resident ----
    T = 6
    target_tokens = jax.random.randint(jax.random.PRNGKey(2), (T, B), 0, O, jnp.int32)
    preds, hiddens, attns = decoder_forward_steps(encoder_outputs, encoder_hidden,
                                                  target_tokens, params)
    jax.block_until_ready((preds, hiddens, attns))

    h_ref = encoder_hidden
    for t in range(T):
        rp, h_ref, ra = decoder_reference(encoder_outputs, h_ref,
                                          target_tokens[t], params)
        np.testing.assert_allclose(np.asarray(preds[t]), np.asarray(rp),
                                   rtol=1e-3, atol=1e-3)
        np.testing.assert_allclose(np.asarray(hiddens[t]), np.asarray(h_ref),
                                   rtol=1e-3, atol=1e-3)
        np.testing.assert_allclose(np.asarray(attns[t]), np.asarray(ra),
                                   rtol=1e-3, atol=1e-3)

    print("KERNEL_OK")
</pallas_src>

<mosaic_0001>
module attributes {stable_mosaic.version = 11 : i64} {
  func.func @decoder_kernel(%arg0: i32, %arg1: memref<8x8x32xf32, #tpu.memory_space<vmem>>, %arg2: memref<8x32xf32, #tpu.memory_space<vmem>>, %arg3: memref<88x512xf32, #tpu.memory_space<vmem>>, %arg4: memref<1x8x16xf32, #tpu.memory_space<vmem>>, %arg5: memref<1x8x128xf32, #tpu.memory_space<vmem>>, %arg6: memref<8x32xf32, #tpu.memory_space<vmem>>) attributes {dimension_semantics = [#tpu.dimension_semantics<arbitrary>], iteration_bounds = array<i64: 1>, scalar_prefetch = 0 : i64, scratch_operands = 1 : i64, tpu.core_type = #tpu.core_type<tc>, window_params = [{pipeline_mode = #tpu.pipeline_mode<synchronous>, transform_indices = @transform_0, window_bounds = array<i64: 8, 8, 32>}, {pipeline_mode = #tpu.pipeline_mode<synchronous>, transform_indices = @transform_1, window_bounds = array<i64: 8, 32>}, {pipeline_mode = #tpu.pipeline_mode<synchronous>, transform_indices = @transform_2, window_bounds = array<i64: 88, 512>}, {transform_indices = @transform_3, window_bounds = array<i64: 1, 8, 16>}, {transform_indices = @transform_4, window_bounds = array<i64: 1, 8, 128>}]} {
    %c0_i32 = arith.constant 0 : i32
    %0 = arith.cmpi eq, %arg0, %c0_i32 : i32
    %1 = arith.extui %0 : i1 to i32
    %c0_i32_0 = arith.constant 0 : i32
    %2 = arith.cmpi ne, %1, %c0_i32_0 : i32
    scf.if %2 {
      %c0_37 = arith.constant 0 : index
      %c0_38 = arith.constant 0 : index
      %94 = vector.load %arg2[%c0_37, %c0_38] : memref<8x32xf32, #tpu.memory_space<vmem>>, vector<8x32xf32>
      %c0_39 = arith.constant 0 : index
      %c0_40 = arith.constant 0 : index
      %95 = vector.load %arg6[%c0_39, %c0_40] : memref<8x32xf32, #tpu.memory_space<vmem>>, vector<8x32xf32>
      tpu.vector_store %arg6[%c0_39, %c0_40], %94 {strides = array<i32>} : memref<8x32xf32, #tpu.memory_space<vmem>>, vector<8x32xf32>,
    } else {
    }
    %c0 = arith.constant 0 : index
    %c0_1 = arith.constant 0 : index
    %c0_2 = arith.constant 0 : index
    %3 = vector.load %arg1[%c0, %c0_1, %c0_2] : memref<8x8x32xf32, #tpu.memory_space<vmem>>, vector<8x8x32xf32>
    %c0_3 = arith.constant 0 : index
    %c0_4 = arith.constant 0 : index
    %4 = vector.load %arg6[%c0_3, %c0_4] : memref<8x32xf32, #tpu.memory_space<vmem>>, vector<8x32xf32>
    %c0_5 = arith.constant 0 : index
    %c0_6 = arith.constant 0 : index
    %c0_7 = arith.constant 0 : index
    %5 = vector.load %arg4[%c0_5, %c0_6, %c0_7] : memref<1x8x16xf32, #tpu.memory_space<vmem>>, vector<1x8x16xf32>
    %6 = vector.shape_cast %5 : vector<1x8x16xf32> to vector<8x16xf32>
    %c0_8 = arith.constant 0 : index
    %c0_9 = arith.constant 0 : index
    %7 = vector.load %arg3[%c0_8, %c0_9] : memref<88x512xf32, #tpu.memory_space<vmem>>, vector<32x128xf32>
    %c0_10 = arith.constant 0 : index
    %c128 = arith.constant 128 : index
    %8 = vector.load %arg3[%c0_10, %c128] : memref<88x512xf32, #tpu.memory_space<vmem>>, vector<32x128xf32>
    %c0_11 = arith.constant 0 : index
    %c256 = arith.constant 256 : index
    %9 = vector.load %arg3[%c0_11, %c256] : memref<88x512xf32, #tpu.memory_space<vmem>>, vector<48x128xf32>
    %c0_12 = arith.constant 0 : index
    %c384 = arith.constant 384 : index
    %10 = vector.load %arg3[%c0_12, %c384] : memref<88x512xf32, #tpu.memory_space<vmem>>, vector<80x128xf32>
    %c80 = arith.constant 80 : index
    %c0_13 = arith.constant 0 : index
    %11 = vector.load %arg3[%c80, %c0_13] : memref<88x512xf32, #tpu.memory_space<vmem>>, vector<1x128xf32>
    %c80_14 = arith.constant 80 : index
    %c128_15 = arith.constant 128 : index
    %12 = vector.load %arg3[%c80_14, %c128_15] : memref<88x512xf32, #tpu.memory_space<vmem>>, vector<1x128xf32>
    %c80_16 = arith.constant 80 : index
    %c256_17 = arith.constant 256 : index
    %13 = vector.load %arg3[%c80_16, %c256_17] : memref<88x512xf32, #tpu.memory_space<vmem>>, vector<1x128xf32>
    %c80_18 = arith.constant 80 : index
    %c384_19 = arith.constant 384 : index
    %14 = vector.load %arg3[%c80_18, %c384_19] : memref<88x512xf32, #tpu.memory_space<vmem>>, vector<1x128xf32>
    %c81 = arith.constant 81 : index
    %c0_20 = arith.constant 0 : index
    %15 = vector.load %arg3[%c81, %c0_20] : memref<88x512xf32, #tpu.memory_space<vmem>>, vector<1x128xf32>
    %cst = arith.constant dense<0.000000e+00> : vector<8x128xf32>
    %16 = tpu.matmul %4, %7, %cst {dimension_numbers = #tpu.dot_dimension_numbers<[1], [0], [0], [1], [0, 0, 1, 1], [], []>} : vector<8x32xf32>, vector<32x128xf32>, vector<8x128xf32> -> vector<8x128xf32>
    %17 = vector.extract_strided_slice %16 {offsets = [0, 0], sizes = [8, 32], strides = [1, 1]} : vector<8x128xf32> to vector<8x32xf32>
    %18 = vector.extract_strided_slice %16 {offsets = [0, 32], sizes = [8, 96], strides = [1, 1]} : vector<8x128xf32> to vector<8x96xf32>
    %19 = vector.extract_strided_slice %13 {offsets = [0, 0], sizes = [1, 96], strides = [1, 1]} : vector<1x128xf32> to vector<1x96xf32>
    %20 = vector.broadcast %19 : vector<1x96xf32> to vector<8x96xf32>
    %21 = arith.addf %18, %20 : vector<8x96xf32>
    %22 = vector.shape_cast %3 : vector<8x8x32xf32> to vector<64x32xf32>
    %cst_21 = arith.constant dense<0.000000e+00> : vector<64x128xf32>
    %23 = tpu.matmul %22, %8, %cst_21 {dimension_numbers = #tpu.dot_dimension_numbers<[1], [0], [0], [1], [0, 0, 1, 1], [], []>} : vector<64x32xf32>, vector<32x128xf32>, vector<64x128xf32> -> vector<64x128xf32>
    %24 = vector.shape_cast %23 : vector<64x128xf32> to vector<8x8x128xf32>
    %25 = vector.extract_strided_slice %24 {offsets = [0, 0, 0], sizes = [8, 8, 32], strides = [1, 1, 1]} : vector<8x8x128xf32> to vector<8x8x32xf32>
    %26 = vector.shape_cast %17 : vector<8x32xf32> to vector<8x1x32xf32>
    %27 = vector.broadcast %26 : vector<8x1x32xf32> to vector<8x8x32xf32>
    %28 = arith.addf %25, %27 : vector<8x8x32xf32>
    %29 = vector.extract_strided_slice %11 {offsets = [0, 0], sizes = [1, 32], strides = [1, 1]} : vector<1x128xf32> to vector<1x32xf32>
    %30 = vector.shape_cast %29 : vector<1x32xf32> to vector<1x1x32xf32>
    %31 = vector.broadcast %30 : vector<1x1x32xf32> to vector<8x8x32xf32>
    %32 = arith.addf %28, %31 : vector<8x8x32xf32>
    %33 = math.tanh %32 : vector<8x8x32xf32>
    %34 = vector.extract_strided_slice %15 {offsets = [0, 0], sizes = [1, 32], strides = [1, 1]} : vector<1x128xf32> to vector<1x32xf32>
    %35 = vector.shape_cast %34 : vector<1x32xf32> to vector<1x1x32xf32>
    %36 = vector.broadcast %35 : vector<1x1x32xf32> to vector<8x8x32xf32>
    %37 = arith.mulf %33, %36 : vector<8x8x32xf32>
    %cst_22 = arith.constant dense<0.000000e+00> : vector<8x8xf32>
    %38 = vector.multi_reduction <add>, %37, %cst_22 [2] : vector<8x8x32xf32> to vector<8x8xf32>
    %cst_23 = arith.constant dense<0xFF800000> : vector<8xf32>
    %39 = vector.multi_reduction <maximumf>, %38, %cst_23 [1] : vector<8x8xf32> to vector<8xf32>
    %40 = vector.shape_cast %39 : vector<8xf32> to vector<8x1xf32>
    %41 = vector.broadcast %40 : vector<8x1xf32> to vector<8x8xf32>
    %42 = arith.subf %38, %41 : vector<8x8xf32>
    %43 = math.exp %42 : vector<8x8xf32>
    %cst_24 = arith.constant dense<0.000000e+00> : vector<8xf32>
    %44 = vector.multi_reduction <add>, %43, %cst_24 [1] : vector<8x8xf32> to vector<8xf32>
    %45 = vector.shape_cast %44 : vector<8xf32> to vector<8x1xf32>
    %46 = tpu.reciprocal %45 : vector<8x1xf32> -> vector<8x1xf32>
    %47 = vector.broadcast %46 : vector<8x1xf32> to vector<8x8xf32>
    %48 = arith.mulf %43, %47 : vector<8x8xf32>
    %49 = vector.shape_cast %48 : vector<8x8xf32> to vector<8x8x1xf32>
    %50 = vector.broadcast %49 : vector<8x8x1xf32> to vector<8x8x32xf32>
    %51 = arith.mulf %50, %3 : vector<8x8x32xf32>
    %cst_25 = arith.constant dense<0.000000e+00> : vector<8x32xf32>
    %52 = vector.multi_reduction <add>, %51, %cst_25 [1] : vector<8x8x32xf32> to vector<8x32xf32>
    %53 = tpu.concatenate %6, %52 in 1 : vector<8x16xf32>, vector<8x32xf32> -> vector<8x48xf32>
    %cst_26 = arith.constant dense<0.000000e+00> : vector<8x128xf32>
    %54 = tpu.matmul %53, %9, %cst_26 {dimension_numbers = #tpu.dot_dimension_numbers<[1], [0], [0], [1], [0, 0, 1, 1], [], []>} : vector<8x48xf32>, vector<48x128xf32>, vector<8x128xf32> -> vector<8x128xf32>
    %55 = vector.broadcast %12 : vector<1x128xf32> to vector<8x128xf32>
    %56 = arith.addf %54, %55 : vector<8x128xf32>
    %57 = vector.extract_strided_slice %56 {offsets = [0, 0], sizes = [8, 32], strides = [1, 1]} : vector<8x128xf32> to vector<8x32xf32>
    %58 = vector.extract_strided_slice %21 {offsets = [0, 0], sizes = [8, 32], strides = [1, 1]} : vector<8x96xf32> to vector<8x32xf32>
    %59 = arith.addf %57, %58 : vector<8x32xf32>
    %60 = arith.negf %59 : vector<8x32xf32>
    %61 = math.exp %60 : vector<8x32xf32>
    %cst_27 = arith.constant 1.000000e+00 : f32
    %62 = vector.broadcast %cst_27 : f32 to vector<8x32xf32>
    %63 = arith.addf %62, %61 : vector<8x32xf32>
    %64 = arith.divf %62, %63 : vector<8x32xf32>
    %65 = vector.extract_strided_slice %56 {offsets = [0, 32], sizes = [8, 32], strides = [1, 1]} : vector<8x128xf32> to vector<8x32xf32>
    %66 = vector.extract_strided_slice %21 {offsets = [0, 32], sizes = [8, 32], strides = [1, 1]} : vector<8x96xf32> to vector<8x32xf32>
    %67 = arith.addf %65, %66 : vector<8x32xf32>
    %68 = arith.negf %67 : vector<8x32xf32>
    %69 = math.exp %68 : vector<8x32xf32>
    %cst_28 = arith.constant 1.000000e+00 : f32
    %70 = vector.broadcast %cst_28 : f32 to vector<8x32xf32>
    %71 = arith.addf %70, %69 : vector<8x32xf32>
    %72 = arith.divf %70, %71 : vector<8x32xf32>
    %73 = vector.extract_strided_slice %56 {offsets = [0, 64], sizes = [8, 32], strides = [1, 1]} : vector<8x128xf32> to vector<8x32xf32>
    %74 = vector.extract_strided_slice %21 {offsets = [0, 64], sizes = [8, 32], strides = [1, 1]} : vector<8x96xf32> to vector<8x32xf32>
    %75 = arith.mulf %64, %74 : vector<8x32xf32>
    %76 = arith.addf %73, %75 : vector<8x32xf32>
    %77 = math.tanh %76 : vector<8x32xf32>
    %cst_29 = arith.constant 1.000000e+00 : f32
    %78 = vector.broadcast %cst_29 : f32 to vector<8x32xf32>
    %79 = arith.subf %78, %72 : vector<8x32xf32>
    %80 = arith.mulf %79, %77 : vector<8x32xf32>
    %81 = arith.mulf %72, %4 : vector<8x32xf32>
    %82 = arith.addf %80, %81 : vector<8x32xf32>
    %83 = tpu.concatenate %82, %52, %6 in 1 : vector<8x32xf32>, vector<8x32xf32>, vector<8x16xf32> -> vector<8x80xf32>
    %cst_30 = arith.constant dense<0.000000e+00> : vector<8x128xf32>
    %84 = tpu.matmul %83, %10, %cst_30 {dimension_numbers = #tpu.dot_dimension_numbers<[1], [0], [0], [1], [0, 0, 1, 1], [], []>} : vector<8x80xf32>, vector<80x128xf32>, vector<8x128xf32> -> vector<8x128xf32>
    %85 = vector.broadcast %14 : vector<1x128xf32> to vector<8x128xf32>
    %86 = arith.addf %84, %85 : vector<8x128xf32>
    %c0_31 = arith.constant 0 : index
    %c0_32 = arith.constant 0 : index
    %87 = vector.load %arg6[%c0_31, %c0_32] : memref<8x32xf32, #tpu.memory_space<vmem>>, vector<8x32xf32>
    tpu.vector_store %arg6[%c0_31, %c0_32], %82 {strides = array<i32>} : memref<8x32xf32, #tpu.memory_space<vmem>>, vector<8x32xf32>,
    %88 = vector.extract_strided_slice %86 {offsets = [0, 0], sizes = [8, 64], strides = [1, 1]} : vector<8x128xf32> to vector<8x64xf32>
    %cst_33 = arith.constant 0.000000e+00 : f32
    %89 = vector.broadcast %cst_33 : f32 to vector<8x24xf32>
    %90 = tpu.concatenate %88, %82, %48, %89 in 1 : vector<8x64xf32>, vector<8x32xf32>, vector<8x8xf32>, vector<8x24xf32> -> vector<8x128xf32>
    %c0_34 = arith.constant 0 : index
    %c0_35 = arith.constant 0 : index
    %c0_36 = arith.constant 0 : index
    %91 = vector.load %arg5[%c0_34, %c0_35, %c0_36] : memref<1x8x128xf32, #tpu.memory_space<vmem>>, vector<1x8x128xf32>
    %92 = vector.shape_cast %91 : vector<1x8x128xf32> to vector<8x128xf32>
    %93 = vector.shape_cast %90 : vector<8x128xf32> to vector<1x8x128xf32>
    tpu.vector_store %arg5[%c0_34, %c0_35, %c0_36], %93 {strides = array<i32>} : memref<1x8x128xf32, #tpu.memory_space<vmem>>, vector<1x8x128xf32>,
    return
  }
  func.func @transform_0(%arg0: i32) -> (i32, i32, i32) {
    %c0_i32 = arith.constant 0 : i32
    %c0_i32_0 = arith.constant 0 : i32
    %c0_i32_1 = arith.constant 0 : i32
    %c0_i32_2 = arith.constant 0 : i32
    return %c0_i32, %c0_i32_0, %c0_i32_1 : i32, i32, i32
  }
  func.func @transform_1(%arg0: i32) -> (i32, i32) {
    %c0_i32 = arith.constant 0 : i32
    %c0_i32_0 = arith.constant 0 : i32
    %c0_i32_1 = arith.constant 0 : i32
    return %c0_i32, %c0_i32_0 : i32, i32
  }
  func.func @transform_2(%arg0: i32) -> (i32, i32) {
    %c0_i32 = arith.constant 0 : i32
    %c0_i32_0 = arith.constant 0 : i32
    %c0_i32_1 = arith.constant 0 : i32
    return %c0_i32, %c0_i32_0 : i32, i32
  }
  func.func @transform_3(%arg0: i32) -> (i32, i32, i32) {
    %c0_i32 = arith.constant 0 : i32
    %c0_i32_0 = arith.constant 0 : i32
    %c0_i32_1 = arith.constant 0 : i32
    return %arg0, %c0_i32, %c0_i32_0 : i32, i32, i32
  }
  func.func @transform_4(%arg0: i32) -> (i32, i32, i32) {
    %c0_i32 = arith.constant 0 : i32
    %c0_i32_0 = arith.constant 0 : i32
    %c0_i32_1 = arith.constant 0 : i32
    return %arg0, %c0_i32, %c0_i32_0 : i32, i32, i32
  }
}

</mosaic_0001>

<llo_original>
// kernel: tpu_custom_call.1
$region0: #{tpu_custom_call.1}
  #allocation0 [shape = 'u32[]', space=smem, size = 0x4, offset = 0x4, fixed_abs, tag = 'smem constant byte address 0x4 - core index']
  #allocation1 [shape = 'u32[144,128]{1,0:T(1,128)}', space=vmem, size = 0x12000, scoped, tag = 'internal scratch']
  #allocation2 [shape = 'f32[8,32]{1,0:T(8,128)}', space=vmem, size = 0x1000, scoped, tag = 'scratch operand']
  %s0 = inlined_call_operand.hbm [shape: f32[8,8,32], index: 0, kind: input, shape index: {}]
  %s1 = inlined_call_operand.hbm [shape: f32[8,32], index: 1, kind: input, shape index: {}]
  %s2 = inlined_call_operand.hbm [shape: f32[88,512], index: 2, kind: input, shape index: {}]
  %s3 = inlined_call_operand.vmem [shape: f32[1,8,16], index: 3, kind: input, shape index: {}]
  %s4 = inlined_call_operand.hbm [shape: f32[1,8,128], index: 4, kind: output, shape index: {}]
  %s5 = sld [smem:[#allocation0]]
  $region42: #{tpu_custom_call.1} parent=0
    _
  %s7 = ssub.s32 1, %s5
  %s8 = scalar_select 0, %s7, %s5
  $region1: #{tpu_custom_call.1} parent=0
    #allocation3 [shape = 'u8[32768]{0}', space=vmem, size = 0x8000, scoped, tag = 'input window, operand 0, single buffered']
    #allocation4 [shape = 's32[1]{0}', space=sflag, size = 0x4, scoped, tag = 'scoped memory for tpu_custom_call.1']
    #allocation5 [shape = 's32[1]{0}', space=sflag, size = 0x4, scoped, tag = 'scoped memory for tpu_custom_call.1']
    #allocation6 [shape = 'u8[4096]{0}', space=vmem, size = 0x1000, scoped, tag = 'input window, operand 1, single buffered']
    #allocation7 [shape = 's32[1]{0}', space=sflag, size = 0x4, scoped, tag = 'scoped memory for tpu_custom_call.1']
    #allocation8 [shape = 'u8[180224]{0}', space=vmem, size = 0x2c000, scoped, tag = 'input window, operand 2, single buffered']
    #allocation9 [shape = 'u8[4096]{0}', space=vmem, size = 0x1000, scoped, tag = 'output window, operand 0, single buffered']
    %9 = vsyncpa [#allocation4], 0
    %10 = vsyncpa [#allocation7], 0
    %11 = vsyncpa [#allocation5], 0
    // Predicated region
    $region2: #{tpu_custom_call.1} parent=1 // pred_check
      _
    $region3: #{tpu_custom_call.1} parent=1 // pred_check_branch
      %13 = sbr.rel (0) target = $region5
    $region4: #{tpu_custom_call.1} parent=1 // pred_region
      %s15 = ssub.s32 1024, 1024
      %16 = vsyncadd [#allocation4], %s15
      %s17 = sshll.u32 [#allocation3], 4
      %s18 = int_to_ptr.vmem [resolvable:$true] %s17
      %23 = dma.hbm_to_vmem [thread:$0]  %s0, 1024, %s18, [#allocation4], 128, 128, 8
    $region5: #{tpu_custom_call.1} parent=1 // pred_fallthru
      _
    // Predicated region
    $region6: #{tpu_custom_call.1} parent=1 // pred_check
      _
    $region7: #{tpu_custom_call.1} parent=1 // pred_check_branch
      %25 = sbr.rel (0) target = $region9
    $region8: #{tpu_custom_call.1} parent=1 // pred_region
      %s27 = ssub.s32 128, 128
      %28 = vsyncadd [#allocation7], %s27
      %s30 = sshll.u32 [#allocation6], 4
      %s31 = int_to_ptr.vmem [resolvable:$true] %s30
      %33 = dma.hbm_to_vmem [thread:$0]  %s1, 128, %s31, [#allocation7]
    $region9: #{tpu_custom_call.1} parent=1 // pred_fallthru
      _
    // Predicated region
    $region10: #{tpu_custom_call.1} parent=1 // pred_check
      _
    $region11: #{tpu_custom_call.1} parent=1 // pred_check_branch
      %35 = sbr.rel (0) target = $region13
    $region12: #{tpu_custom_call.1} parent=1 // pred_region
      %s37 = ssub.s32 5632, 5632
      %38 = vsyncadd [#allocation7], %s37
      %s39 = sshll.u32 [#allocation8], 4
      %s40 = int_to_ptr.vmem [resolvable:$true] %s39
      %45 = dma.hbm_to_vmem [thread:$0]  %s2, 5632, %s40, [#allocation7], 512, 512, 32
    $region13: #{tpu_custom_call.1} parent=1 // pred_fallthru
      _
    // Predicated region
    $region14: #{tpu_custom_call.1} parent=1 // pred_check
      _
    $region15: #{tpu_custom_call.1} parent=1 // pred_check_branch
      %47 = sbr.rel (0) target = $region17
    $region16: #{tpu_custom_call.1} parent=1 // pred_region
      _
    $region17: #{tpu_custom_call.1} parent=1 // pred_fallthru
      _
    // Predicated region
    $region18: #{tpu_custom_call.1} parent=1 // pred_check
      _
    $region19: #{tpu_custom_call.1} parent=1 // pred_check_branch
      %49 = sbr.rel (0) target = $region21
    $region20: #{tpu_custom_call.1} parent=1 // pred_region
      %50 = dma.done [#allocation4], 1024
    $region21: #{tpu_custom_call.1} parent=1 // pred_fallthru
      _
    // Predicated region
    $region22: #{tpu_custom_call.1} parent=1 // pred_check
      _
    $region23: #{tpu_custom_call.1} parent=1 // pred_check_branch
      %52 = sbr.rel (0) target = $region25
    $region24: #{tpu_custom_call.1} parent=1 // pred_region
      %53 = dma.done [#allocation7], 128
    $region25: #{tpu_custom_call.1} parent=1 // pred_fallthru
      _
    // Predicated region
    $region26: #{tpu_custom_call.1} parent=1 // pred_check
      _
    $region27: #{tpu_custom_call.1} parent=1 // pred_check_branch
      %55 = sbr.rel (0) target = $region29
    $region28: #{tpu_custom_call.1} parent=1 // pred_region
      %56 = dma.done [#allocation7], 5632
    $region29: #{tpu_custom_call.1} parent=1 // pred_fallthru
      _
    %p57 = scmp.eq.s32.totalorder 0, 0
    // Predicated region
    $region30: #{tpu_custom_call.1} parent=1 // pred_check
      %p58 = pneg %p57
    $region31: #{tpu_custom_call.1} parent=1 // pred_check_branch
      %60 = sbr.rel (%p58) target = $region33
    $region32: #{tpu_custom_call.1} parent=1 // pred_region
      %v61 = vld [vmem:[#allocation6] sm:$0xff]
      %vm62 = vcmask 261120
      %63 = vst.msk [vmem:[#allocation2] sm:$0xff] %vm62, %v61
    $region33: #{tpu_custom_call.1} parent=1 // pred_fallthru
      _
    %v64 = vld [vmem:[#allocation3] sm:$0xff]
    %v65 = vld [vmem:[#allocation3 + $0x8] sm:$0xff]
    %v66 = vld [vmem:[#allocation3 + $0x10] sm:$0xff]
    %v67 = vld [vmem:[#allocation3 + $0x18] sm:$0xff]
    %v68 = vld [vmem:[#allocation3 + $0x20] sm:$0xff]
    %v69 = vld [vmem:[#allocation3 + $0x28] sm:$0xff]
    %v70 = vld [vmem:[#allocation3 + $0x30] sm:$0xff]
    %v71 = vld [vmem:[#allocation3 + $0x38] sm:$0xff]
    %v72 = vld [vmem:[#allocation2] sm:$0xff]
    %v73 = vld [vmem:[%s3] sm:$0xff]
    %v74 = vld [vmem:[#allocation8] sm:$0xff]
    %v75 = vld [vmem:[#allocation8 + $0x20] sm:$0xff]
    %v76 = vld [vmem:[#allocation8 + $0x40] sm:$0xff]
    %v77 = vld [vmem:[#allocation8 + $0x60] sm:$0xff]
    %v78 = vld [vmem:[#allocation8 + $0x8] sm:$0xff]
    %v79 = vld [vmem:[#allocation8 + $0x28] sm:$0xff]
    %v80 = vld [vmem:[#allocation8 + $0x48] sm:$0xff]
    %v81 = vld [vmem:[#allocation8 + $0x68] sm:$0xff]
    %v82 = vld [vmem:[#allocation8 + $0x10] sm:$0xff]
    %v83 = vld [vmem:[#allocation8 + $0x30] sm:$0xff]
    %v84 = vld [vmem:[#allocation8 + $0x50] sm:$0xff]
    %v85 = vld [vmem:[#allocation8 + $0x70] sm:$0xff]
    %v86 = vld [vmem:[#allocation8 + $0x90] sm:$0xff]
    %v87 = vld [vmem:[#allocation8 + $0xb0] sm:$0xff]
    %v88 = vld [vmem:[#allocation8 + $0x18] sm:$0xff]
    %v89 = vld [vmem:[#allocation8 + $0x38] sm:$0xff]
    %v90 = vld [vmem:[#allocation8 + $0x58] sm:$0xff]
    %v91 = vld [vmem:[#allocation8 + $0x78] sm:$0xff]
    %v92 = vld [vmem:[#allocation8 + $0x98] sm:$0xff]
    %v93 = vld [vmem:[#allocation8 + $0xb8] sm:$0xff]
    %v94 = vld [vmem:[#allocation8 + $0xd8] sm:$0xff]
    %v95 = vld [vmem:[#allocation8 + $0xf8] sm:$0xff]
    %v96 = vld [vmem:[#allocation8 + $0x118] sm:$0xff]
    %v97 = vld [vmem:[#allocation8 + $0x138] sm:$0xff]
    %v98 = vld [vmem:[#allocation8 + $0x140] ss:$0 sm:$0xff]
    %v99 = vld [vmem:[#allocation8 + $0x148] ss:$0 sm:$0xff]
    %v100 = vld [vmem:[#allocation8 + $0x150] ss:$0 sm:$0xff]
    %v101 = vld [vmem:[#allocation8 + $0x158] ss:$0 sm:$0xff]
    %v102 = vld [vmem:[#allocation8 + $0x141] ss:$0 sm:$0xff]
    %vm103 = vcmask 261120
    %v105 = vsel %vm103, %v72, 0
    %107 = vmatprep.subr.mxu0 0.0
    %108 = vmatpush1.msra.mxu0 %v74
    %109 = vmatprep.subr.mxu0 0.0
    %110 = vmatpush1.msra.mxu0 %v75
    %111 = vmatprep.subr.mxu0 0.0
    %112 = vmatpush1.msra.mxu0 %v76
    %113 = vmatprep.subr.mxu0 0.0
    %114 = vmatpush1.msra.mxu0 %v77
    %115 = vmatprep.subr.mxu0 0.0
    %116 = vmatpush1.msra.mxu0 0.0
    %117 = vmatprep.subr.mxu0 0.0
    %118 = vmatpush1.msra.mxu0 0.0
    %119 = vmatprep.subr.mxu0 0.0
    %120 = vmatpush1.msra.mxu0 0.0
    %121 = vmatprep.subr.mxu0 0.0
    %122 = vmatpush1.msra.mxu0 0.0
    %123 = vmatprep.subr.mxu0 0.0
    %124 = vmatpush1.msra.mxu0 0.0
    %125 = vmatprep.subr.mxu0 0.0
    %126 = vmatpush1.msra.mxu0 0.0
    %127 = vmatprep.subr.mxu0 0.0
    %128 = vmatpush1.msra.mxu0 0.0
    %129 = vmatprep.subr.mxu0 0.0
    %130 = vmatpush1.msra.mxu0 0.0
    %131 = vmatprep.subr.mxu0 0.0
    %132 = vmatpush1.msra.mxu0 0.0
    %133 = vmatprep.subr.mxu0 0.0
    %134 = vmatpush1.msra.mxu0 0.0
    %135 = vmatprep.subr.mxu0 0.0
    %136 = vmatpush1.msra.mxu0 0.0
    %137 = vmatprep.subr.mxu0 0.0
    %138 = vmatpush1.msra.mxu0 0.0
    %139 = vmatprep.subr.mxu0 0.0
    %140 = vmatpush1.msra.mxu0 0.0
    %141 = vmatprep.subr.mxu0 0.0
    %142 = vmatpush1.msra.mxu0 0.0
    %143 = vmatprep.subr.mxu0 0.0
    %144 = vmatpush1.msra.mxu0 0.0
    %145 = vmatprep.subr.mxu0 0.0
    %146 = vmatpush1.msra.mxu0 0.0
    %147 = vmatprep.subr.mxu0 0.0
    %148 = vmatpush1.msra.mxu0 0.0
    %149 = vmatprep.subr.mxu0 0.0
    %150 = vmatpush1.msra.mxu0 0.0
    %151 = vmatprep.subr.mxu0 0.0
    %152 = vmatpush1.msra.mxu0 0.0
    %153 = vmatprep.subr.mxu0 0.0
    %154 = vmatpush1.msra.mxu0 0.0
    %155 = vmatprep.subr.mxu0 0.0
    %156 = vmatpush1.msra.mxu0 0.0
    %157 = vmatprep.subr.mxu0 0.0
    %158 = vmatpush1.msra.mxu0 0.0
    %159 = vmatprep.subr.mxu0 0.0
    %160 = vmatpush1.msra.mxu0 0.0
    %161 = vmatprep.subr.mxu0 0.0
    %162 = vmatpush1.msra.mxu0 0.0
    %163 = vmatprep.subr.mxu0 0.0
    %164 = vmatpush1.msra.mxu0 0.0
    %165 = vmatprep.subr.mxu0 0.0
    %166 = vmatpush1.msra.mxu0 0.0
    %167 = vmatprep.subr.mxu0 0.0
    %168 = vmatpush1.msra.mxu0 0.0
    %169 = vmatprep.subr.mxu0 0.0
    %170 = vmatpush1.msra.mxu0 0.0
    %171 = vmatprep.mubr.f32.mxu0 0.0
    %172 = vmatmul.mubr.f32.gmra.mrb[0].mxu0 %v105
    %v173 = vpop.f32.mrb[0].mxu0
    %v174 = vadd.f32 0.0, %v173
    %v175 = vpop.f32.mrb[0].mxu0
    %176 = vdwg.mxu0
    %178 = vrot.lane.b32.xlu0 %v100, 32
    %v179 = vpop.permute.xlu0 %178
    %v181 = vadd.f32 %v174, %v179
    %v183 = vsel %vm103, %v64, 0
    %v186 = vsel %vm103, %v65, 0
    %v189 = vsel %vm103, %v66, 0
    %v192 = vsel %vm103, %v67, 0
    %v195 = vsel %vm103, %v68, 0
    %v198 = vsel %vm103, %v69, 0
    %v201 = vsel %vm103, %v70, 0
    %v204 = vsel %vm103, %v71, 0
    %206 = vmatprep.subr.mxu0 0.0
    %207 = vmatpush1.msra.mxu0 %v78
    %208 = vmatprep.subr.mxu0 0.0
    %209 = vmatpush1.msra.mxu0 %v79
    %210 = vmatprep.subr.mxu0 0.0
    %211 = vmatpush1.msra.mxu0 %v80
    %212 = vmatprep.subr.mxu0 0.0
    %213 = vmatpush1.msra.mxu0 %v81
    %214 = vmatprep.subr.mxu0 0.0
    %215 = vmatpush1.msra.mxu0 0.0
    %216 = vmatprep.subr.mxu0 0.0
    %217 = vmatpush1.msra.mxu0 0.0
    %218 = vmatprep.subr.mxu0 0.0
    %219 = vmatpush1.msra.mxu0 0.0
    %220 = vmatprep.subr.mxu0 0.0
    %221 = vmatpush1.msra.mxu0 0.0
    %222 = vmatprep.subr.mxu0 0.0
    %223 = vmatpush1.msra.mxu0 0.0
    %224 = vmatprep.subr.mxu0 0.0
    %225 = vmatpush1.msra.mxu0 0.0
    %226 = vmatprep.subr.mxu0 0.0
    %227 = vmatpush1.msra.mxu0 0.0
    %228 = vmatprep.subr.mxu0 0.0
    %229 = vmatpush1.msra.mxu0 0.0
    %230 = vmatprep.subr.mxu0 0.0
    %231 = vmatpush1.msra.mxu0 0.0
    %232 = vmatprep.subr.mxu0 0.0
    %233 = vmatpush1.msra.mxu0 0.0
    %234 = vmatprep.subr.mxu0 0.0
    %235 = vmatpush1.msra.mxu0 0.0
    %236 = vmatprep.subr.mxu0 0.0
    %237 = vmatpush1.msra.mxu0 0.0
    %238 = vmatprep.subr.mxu0 0.0
    %239 = vmatpush1.msra.mxu0 0.0
    %240 = vmatprep.subr.mxu0 0.0
    %241 = vmatpush1.msra.mxu0 0.0
    %242 = vmatprep.subr.mxu0 0.0
    %243 = vmatpush1.msra.mxu0 0.0
    %244 = vmatprep.subr.mxu0 0.0
    %245 = vmatpush1.msra.mxu0 0.0
    %246 = vmatprep.subr.mxu0 0.0
    %247 = vmatpush1.msra.mxu0 0.0
    %248 = vmatprep.subr.mxu0 0.0
    %249 = vmatpush1.msra.mxu0 0.0
    %250 = vmatprep.subr.mxu0 0.0
    %251 = vmatpush1.msra.mxu0 0.0
    %252 = vmatprep.subr.mxu0 0.0
    %253 = vmatpush1.msra.mxu0 0.0
    %254 = vmatprep.subr.mxu0 0.0
    %255 = vmatpush1.msra.mxu0 0.0
    %256 = vmatprep.subr.mxu0 0.0
    %257 = vmatpush1.msra.mxu0 0.0
    %258 = vmatprep.subr.mxu0 0.0
    %259 = vmatpush1.msra.mxu0 0.0
    %260 = vmatprep.subr.mxu0 0.0
    %261 = vmatpush1.msra.mxu0 0.0
    %262 = vmatprep.subr.mxu0 0.0
    %263 = vmatpush1.msra.mxu0 0.0
    %264 = vmatprep.subr.mxu0 0.0
    %265 = vmatpush1.msra.mxu0 0.0
    %266 = vmatprep.subr.mxu0 0.0
    %267 = vmatpush1.msra.mxu0 0.0
    %268 = vmatprep.subr.mxu0 0.0
    %269 = vmatpush1.msra.mxu0 0.0
    %270 = vmatprep.mubr.f32.mxu0 0.0
    %271 = vmatmul.mubr.f32.gmra.mrb[0].mxu0 %v183
    %v272 = vpop.f32.mrb[0].mxu0
    %v273 = vadd.f32 0.0, %v272
    %v274 = vpop.f32.mrb[0].mxu0
    %275 = vmatprep.mubr.f32.mxu0 0.0
    %276 = vmatmul.mubr.f32.gmra.mrb[0].mxu0 %v186
    %v277 = vpop.f32.mrb[0].mxu0
    %v278 = vadd.f32 0.0, %v277
    %v279 = vpop.f32.mrb[0].mxu0
    %280 = vmatprep.mubr.f32.mxu0 0.0
    %281 = vmatmul.mubr.f32.gmra.mrb[0].mxu0 %v189
    %v282 = vpop.f32.mrb[0].mxu0
    %v283 = vadd.f32 0.0, %v282
    %v284 = vpop.f32.mrb[0].mxu0
    %285 = vmatprep.mubr.f32.mxu0 0.0
    %286 = vmatmul.mubr.f32.gmra.mrb[0].mxu0 %v192
    %v287 = vpop.f32.mrb[0].mxu0
    %v288 = vadd.f32 0.0, %v287
    %v289 = vpop.f32.mrb[0].mxu0
    %290 = vmatprep.mubr.f32.mxu0 0.0
    %291 = vmatmul.mubr.f32.gmra.mrb[0].mxu0 %v195
    %v292 = vpop.f32.mrb[0].mxu0
    %v293 = vadd.f32 0.0, %v292
    %v294 = vpop.f32.mrb[0].mxu0
    %295 = vmatprep.mubr.f32.mxu0 0.0
    %296 = vmatmul.mubr.f32.gmra.mrb[0].mxu0 %v198
    %v297 = vpop.f32.mrb[0].mxu0
    %v298 = vadd.f32 0.0, %v297
    %v299 = vpop.f32.mrb[0].mxu0
    %300 = vmatprep.mubr.f32.mxu0 0.0
    %301 = vmatmul.mubr.f32.gmra.mrb[0].mxu0 %v201
    %v302 = vpop.f32.mrb[0].mxu0
    %v303 = vadd.f32 0.0, %v302
    %v304 = vpop.f32.mrb[0].mxu0
    %305 = vmatprep.mubr.f32.mxu0 0.0
    %306 = vmatmul.mubr.f32.gmra.mrb[0].mxu0 %v204
    %v307 = vpop.f32.mrb[0].mxu0
    %v308 = vadd.f32 0.0, %v307
    %v309 = vpop.f32.mrb[0].mxu0
    %310 = vdwg.mxu0
    %v312 = vcombine.high %v174, %v174
    %v314 = vunpack.c.l.s4 1966171168
    %v315 = vunpack.c.0.s8 %v314
    %v316 = vlaneseq
    %v317 = vshrl.u32 %v316, 7
    %v318 = vsub.s32 %v315, %v317
    %v319 = vrot.slane %v174, %v318
    %v321 = vunpack.c.l.s4 1966171168
    %v322 = vunpack.c.0.s8 %v321
    %v323 = vlaneseq
    %v324 = vshrl.u32 %v323, 7
    %v325 = vsub.s32 %v322, %v324
    %v326 = vrot.slane %v312, %v325
    %v327 = vcombine.high %v319, %v319
    %v328 = vcombine.high %v326, %v326
    %v330 = vunpack.c.l.s4 1966171168
    %v331 = vunpack.c.0.s8 %v330
    %v332 = vlaneseq
    %v333 = vshrl.u32 %v332, 7
    %v334 = vsub.s32 %v331, %v333
    %v335 = vrot.slane %v319, %v334
    %v337 = vunpack.c.l.s4 1966171168
    %v338 = vunpack.c.0.s8 %v337
    %v339 = vlaneseq
    %v340 = vshrl.u32 %v339, 7
    %v341 = vsub.s32 %v338, %v340
    %v342 = vrot.slane %v326, %v341
    %v344 = vunpack.c.l.s4 1966171168
    %v345 = vunpack.c.0.s8 %v344
    %v346 = vlaneseq
    %v347 = vshrl.u32 %v346, 7
    %v348 = vsub.s32 %v345, %v347
    %v349 = vrot.slane %v327, %v348
    %v351 = vunpack.c.l.s4 1966171168
    %v352 = vunpack.c.0.s8 %v351
    %v353 = vlaneseq
    %v354 = vshrl.u32 %v353, 7
    %v355 = vsub.s32 %v352, %v354
    %v356 = vrot.slane %v328, %v355
    %v357 = vcombine.high %v335, %v335
    %v358 = vcombine.high %v342, %v342
    %v359 = vcombine.high %v349, %v349
    %v360 = vcombine.high %v356, %v356
    %v361 = vlaneseq
    %v362 = vshrl.u32 %v361, 7
    %v363 = vsub.s32 0, %v362
    %v364 = vrot.slane %v335, %v363
    %v365 = vlaneseq
    %v366 = vshrl.u32 %v365, 7
    %v367 = vsub.s32 0, %v366
    %v368 = vrot.slane %v349, %v367
    %v369 = vlaneseq
    %v370 = vshrl.u32 %v369, 7
    %v371 = vsub.s32 0, %v370
    %v372 = vrot.slane %v357, %v371
    %v373 = vlaneseq
    %v374 = vshrl.u32 %v373, 7
    %v375 = vsub.s32 0, %v374
    %v376 = vrot.slane %v359, %v375
    %v377 = vlaneseq
    %v378 = vshrl.u32 %v377, 7
    %v379 = vsub.s32 0, %v378
    %v380 = vrot.slane %v342, %v379
    %v381 = vlaneseq
    %v382 = vshrl.u32 %v381, 7
    %v383 = vsub.s32 0, %v382
    %v384 = vrot.slane %v356, %v383
    %v385 = vlaneseq
    %v386 = vshrl.u32 %v385, 7
    %v387 = vsub.s32 0, %v386
    %v388 = vrot.slane %v358, %v387
    %v389 = vlaneseq
    %v390 = vshrl.u32 %v389, 7
    %v391 = vsub.s32 0, %v390
    %v392 = vrot.slane %v360, %v391
    %v401 = vadd.f32 %v273, %v364
    %v402 = vadd.f32 %v278, %v368
    %v403 = vadd.f32 %v283, %v372
    %v404 = vadd.f32 %v288, %v376
    %v405 = vadd.f32 %v293, %v380
    %v406 = vadd.f32 %v298, %v384
    %v407 = vadd.f32 %v303, %v388
    %v408 = vadd.f32 %v308, %v392
    %v409 = vadd.f32 %v401, %v98
    %v410 = vadd.f32 %v402, %v98
    %v411 = vadd.f32 %v403, %v98
    %v412 = vadd.f32 %v404, %v98
    %v413 = vadd.f32 %v405, %v98
    %v414 = vadd.f32 %v406, %v98
    %v415 = vadd.f32 %v407, %v98
    %v416 = vadd.f32 %v408, %v98
    %v417 = vtanh.pop %v409
    %v418 = vtanh.pop %v410
    %v419 = vtanh.pop %v411
    %v420 = vtanh.pop %v412
    %v421 = vtanh.pop %v413
    %v422 = vtanh.pop %v414
    %v423 = vtanh.pop %v415
    %v424 = vtanh.pop %v416
    %v425 = vmul.f32 %v417, %v102
    %v426 = vmul.f32 %v418, %v102
    %v427 = vmul.f32 %v419, %v102
    %v428 = vmul.f32 %v420, %v102
    %v429 = vmul.f32 %v421, %v102
    %v430 = vmul.f32 %v422, %v102
    %v431 = vmul.f32 %v423, %v102
    %v432 = vmul.f32 %v424, %v102
    %v433 = vsel %vm103, %v425, 0.0
    %434 = vadd.xlane.f32.xlu0 %v433
    %v435 = vpop.xlane.xlu0 %434
    %v436 = vsel %vm103, %v426, 0.0
    %437 = vadd.xlane.f32.xlu0 %v436
    %v438 = vpop.xlane.xlu0 %437
    %v439 = vsel %vm103, %v427, 0.0
    %440 = vadd.xlane.f32.xlu0 %v439
    %v441 = vpop.xlane.xlu0 %440
    %v442 = vsel %vm103, %v428, 0.0
    %443 = vadd.xlane.f32.xlu0 %v442
    %v444 = vpop.xlane.xlu0 %443
    %v445 = vsel %vm103, %v429, 0.0
    %446 = vadd.xlane.f32.xlu0 %v445
    %v447 = vpop.xlane.xlu0 %446
    %v448 = vsel %vm103, %v430, 0.0
    %449 = vadd.xlane.f32.xlu0 %v448
    %v450 = vpop.xlane.xlu0 %449
    %v451 = vsel %vm103, %v431, 0.0
    %452 = vadd.xlane.f32.xlu0 %v451
    %v453 = vpop.xlane.xlu0 %452
    %v454 = vsel %vm103, %v432, 0.0
    %455 = vadd.xlane.f32.xlu0 %v454
    %v456 = vpop.xlane.xlu0 %455
    %v465 = vlaneseq
    %v466 = vand.u32 %v465, 127
    %v467 = vlaneseq
    %v468 = vshrl.u32 %v467, 7
    %v469 = vsub.s32 %v466, %v468
    %v470 = vrot.slane %v435, %v469
    %v471 = vlaneseq
    %v472 = vshrl.u32 %v471, 7
    %v473 = vsub.s32 %v466, %v472
    %v474 = vrot.slane %v438, %v473
    %v475 = vlaneseq
    %v476 = vshrl.u32 %v475, 7
    %v477 = vsub.s32 %v466, %v476
    %v478 = vrot.slane %v441, %v477
    %v479 = vlaneseq
    %v480 = vshrl.u32 %v479, 7
    %v481 = vsub.s32 %v466, %v480
    %v482 = vrot.slane %v444, %v481
    %v483 = vlaneseq
    %v484 = vshrl.u32 %v483, 7
    %v485 = vsub.s32 %v466, %v484
    %v486 = vrot.slane %v447, %v485
    %v487 = vlaneseq
    %v488 = vshrl.u32 %v487, 7
    %v489 = vsub.s32 %v466, %v488
    %v490 = vrot.slane %v450, %v489
    %v491 = vlaneseq
    %v492 = vshrl.u32 %v491, 7
    %v493 = vsub.s32 %v466, %v492
    %v494 = vrot.slane %v453, %v493
    %v495 = vlaneseq
    %v496 = vshrl.u32 %v495, 7
    %v497 = vsub.s32 %v466, %v496
    %v498 = vrot.slane %v456, %v497
    %vm499 = vcmask 1041409
    %v500 = vsel %vm499, %v474, %v470
    %vm501 = vcmask 1042434
    %v502 = vsel %vm501, %v478, %v500
    %vm503 = vcmask 1043459
    %v504 = vsel %vm503, %v482, %v502
    %vm505 = vcmask 1044484
    %v506 = vsel %vm505, %v486, %v504
    %vm507 = vcmask 1045509
    %v508 = vsel %vm507, %v490, %v506
    %vm509 = vcmask 1046534
    %v510 = vsel %vm509, %v494, %v508
    %vm511 = vcmask 1047559
    %v512 = vsel %vm511, %v498, %v510
    %vm514 = vcmask 64512
    %v515 = vsel %vm514, %v512, -inf
    %516 = vmax.xlane.f32.xlu0 %v515
    %v517 = vpop.xlane.xlu0 %516
    %v519 = vlaneseq
    %v520 = vshrl.u32 %v519, 7
    %v521 = vsub.s32 0, %v520
    %v522 = vrot.slane %v517, %v521
    %v523 = vlaneseq
    %v524 = vshrl.u32 %v523, 7
    %v525 = vsub.s32 1, %v524
    %v526 = vrot.slane %v517, %v525
    %v527 = vlaneseq
    %v528 = vshrl.u32 %v527, 7
    %v529 = vsub.s32 2, %v528
    %v530 = vrot.slane %v517, %v529
    %v531 = vlaneseq
    %v532 = vshrl.u32 %v531, 7
    %v533 = vsub.s32 3, %v532
    %v534 = vrot.slane %v517, %v533
    %v535 = vlaneseq
    %v536 = vshrl.u32 %v535, 7
    %v537 = vsub.s32 4, %v536
    %v538 = vrot.slane %v517, %v537
    %v539 = vlaneseq
    %v540 = vshrl.u32 %v539, 7
    %v541 = vsub.s32 5, %v540
    %v542 = vrot.slane %v517, %v541
    %v543 = vlaneseq
    %v544 = vshrl.u32 %v543, 7
    %v545 = vsub.s32 6, %v544
    %v546 = vrot.slane %v517, %v545
    %v547 = vlaneseq
    %v548 = vshrl.u32 %v547, 7
    %v549 = vsub.s32 7, %v548
    %v550 = vrot.slane %v517, %v549
    %v559 = vsub.f32 %v435, %v522
    %v560 = vsub.f32 %v438, %v526
    %v561 = vsub.f32 %v441, %v530
    %v562 = vsub.f32 %v444, %v534
    %v563 = vsub.f32 %v447, %v538
    %v564 = vsub.f32 %v450, %v542
    %v565 = vsub.f32 %v453, %v546
    %v566 = vsub.f32 %v456, %v550
    %v567 = vmul.f32 %v559, 1.442695
    %v568 = vpow.pop %v567
    %v569 = vmul.f32 %v560, 1.442695
    %v570 = vpow.pop %v569
    %v571 = vmul.f32 %v561, 1.442695
    %v572 = vpow.pop %v571
    %v573 = vmul.f32 %v562, 1.442695
    %v574 = vpow.pop %v573
    %v575 = vmul.f32 %v563, 1.442695
    %v576 = vpow.pop %v575
    %v577 = vmul.f32 %v564, 1.442695
    %v578 = vpow.pop %v577
    %v579 = vmul.f32 %v565, 1.442695
    %v580 = vpow.pop %v579
    %v581 = vmul.f32 %v566, 1.442695
    %v582 = vpow.pop %v581
    %591 = vset.pattern.permute.xlu0 0
    %592 = vperm.xlu0 %591, %v568
    %v593 = vpop.permute.xlu0 %592
    %594 = vset.pattern.permute.xlu0 0
    %595 = vperm.xlu0 %594, %v570
    %v596 = vpop.permute.xlu0 %595
    %597 = vset.pattern.permute.xlu0 0
    %598 = vperm.xlu0 %597, %v572
    %v599 = vpop.permute.xlu0 %598
    %600 = vset.pattern.permute.xlu0 0
    %601 = vperm.xlu0 %600, %v574
    %v602 = vpop.permute.xlu0 %601
    %603 = vset.pattern.permute.xlu0 0
    %604 = vperm.xlu0 %603, %v576
    %v605 = vpop.permute.xlu0 %604
    %606 = vset.pattern.permute.xlu0 0
    %607 = vperm.xlu0 %606, %v578
    %v608 = vpop.permute.xlu0 %607
    %609 = vset.pattern.permute.xlu0 0
    %610 = vperm.xlu0 %609, %v580
    %v611 = vpop.permute.xlu0 %610
    %612 = vset.pattern.permute.xlu0 0
    %613 = vperm.xlu0 %612, %v582
    %v614 = vpop.permute.xlu0 %613
    %v615 = vlaneseq
    %v616 = vshrl.u32 %v615, 7
    %v617 = vsub.s32 %v466, %v616
    %v618 = vrot.slane %v593, %v617
    %v619 = vlaneseq
    %v620 = vshrl.u32 %v619, 7
    %v621 = vsub.s32 %v466, %v620
    %v622 = vrot.slane %v596, %v621
    %v623 = vlaneseq
    %v624 = vshrl.u32 %v623, 7
    %v625 = vsub.s32 %v466, %v624
    %v626 = vrot.slane %v599, %v625
    %v627 = vlaneseq
    %v628 = vshrl.u32 %v627, 7
    %v629 = vsub.s32 %v466, %v628
    %v630 = vrot.slane %v602, %v629
    %v631 = vlaneseq
    %v632 = vshrl.u32 %v631, 7
    %v633 = vsub.s32 %v466, %v632
    %v634 = vrot.slane %v605, %v633
    %v635 = vlaneseq
    %v636 = vshrl.u32 %v635, 7
    %v637 = vsub.s32 %v466, %v636
    %v638 = vrot.slane %v608, %v637
    %v639 = vlaneseq
    %v640 = vshrl.u32 %v639, 7
    %v641 = vsub.s32 %v466, %v640
    %v642 = vrot.slane %v611, %v641
    %v643 = vlaneseq
    %v644 = vshrl.u32 %v643, 7
    %v645 = vsub.s32 %v466, %v644
    %v646 = vrot.slane %v614, %v645
    %v647 = vsel %vm499, %v622, %v618
    %v648 = vsel %vm501, %v626, %v647
    %v649 = vsel %vm503, %v630, %v648
    %v650 = vsel %vm505, %v634, %v649
    %v651 = vsel %vm507, %v638, %v650
    %v652 = vsel %vm509, %v642, %v651
    %v653 = vsel %vm511, %v646, %v652
    %v655 = vsel %vm514, %v653, 0.0
    %656 = vadd.xlane.f32.xlu0 %v655
    %v657 = vpop.xlane.xlu0 %656
    %v658 = vrcp.pop %v657
    %v660 = vlaneseq
    %v661 = vshrl.u32 %v660, 7
    %v662 = vsub.s32 0, %v661
    %v663 = vrot.slane %v658, %v662
    %v664 = vlaneseq
    %v665 = vshrl.u32 %v664, 7
    %v666 = vsub.s32 1, %v665
    %v667 = vrot.slane %v658, %v666
    %v668 = vlaneseq
    %v669 = vshrl.u32 %v668, 7
    %v670 = vsub.s32 2, %v669
    %v671 = vrot.slane %v658, %v670
    %v672 = vlaneseq
    %v673 = vshrl.u32 %v672, 7
    %v674 = vsub.s32 3, %v673
    %v675 = vrot.slane %v658, %v674
    %v676 = vlaneseq
    %v677 = vshrl.u32 %v676, 7
    %v678 = vsub.s32 4, %v677
    %v679 = vrot.slane %v658, %v678
    %v680 = vlaneseq
    %v681 = vshrl.u32 %v680, 7
    %v682 = vsub.s32 5, %v681
    %v683 = vrot.slane %v658, %v682
    %v684 = vlaneseq
    %v685 = vshrl.u32 %v684, 7
    %v686 = vsub.s32 6, %v685
    %v687 = vrot.slane %v658, %v686
    %v688 = vlaneseq
    %v689 = vshrl.u32 %v688, 7
    %v690 = vsub.s32 7, %v689
    %v691 = vrot.slane %v658, %v690
    %v700 = vmul.f32 %v568, %v663
    %v701 = vmul.f32 %v570, %v667
    %v702 = vmul.f32 %v572, %v671
    %v703 = vmul.f32 %v574, %v675
    %v704 = vmul.f32 %v576, %v679
    %v705 = vmul.f32 %v578, %v683
    %v706 = vmul.f32 %v580, %v687
    %v707 = vmul.f32 %v582, %v691
    %709 = vset.pattern.permute.xlu0 0
    %710 = vperm.xlu0 %709, %v700
    %v711 = vpop.permute.xlu0 %710
    %714 = vset.pattern.permute.xlu0 0
    %715 = vperm.xlu0 %714, %v701
    %v716 = vpop.permute.xlu0 %715
    %719 = vset.pattern.permute.xlu0 0
    %720 = vperm.xlu0 %719, %v702
    %v721 = vpop.permute.xlu0 %720
    %724 = vset.pattern.permute.xlu0 0
    %725 = vperm.xlu0 %724, %v703
    %v726 = vpop.permute.xlu0 %725
    %729 = vset.pattern.permute.xlu0 0
    %730 = vperm.xlu0 %729, %v704
    %v731 = vpop.permute.xlu0 %730
    %734 = vset.pattern.permute.xlu0 0
    %735 = vperm.xlu0 %734, %v705
    %v736 = vpop.permute.xlu0 %735
    %739 = vset.pattern.permute.xlu0 0
    %740 = vperm.xlu0 %739, %v706
    %v741 = vpop.permute.xlu0 %740
    %744 = vset.pattern.permute.xlu0 0
    %745 = vperm.xlu0 %744, %v707
    %v746 = vpop.permute.xlu0 %745
    %v748 = vmul.f32 %v711, %v64
    %v749 = vmul.f32 %v716, %v65
    %v750 = vmul.f32 %v721, %v66
    %v751 = vmul.f32 %v726, %v67
    %v752 = vmul.f32 %v731, %v68
    %v753 = vmul.f32 %v736, %v69
    %v754 = vmul.f32 %v741, %v70
    %v755 = vmul.f32 %v746, %v71
    %v756 = vsel %vm103, %v748, 0.0
    %v757 = vrot.slane %v756, 4
    %v758 = vadd.f32 %v756, %v757
    %v759 = vrot.slane %v758, 2
    %v760 = vadd.f32 %v758, %v759
    %v761 = vrot.slane %v760, 1
    %v762 = vadd.f32 %v760, %v761
    %v763 = vsel %vm103, %v749, 0.0
    %v764 = vrot.slane %v763, 4
    %v765 = vadd.f32 %v763, %v764
    %v766 = vrot.slane %v765, 2
    %v767 = vadd.f32 %v765, %v766
    %v768 = vrot.slane %v767, 1
    %v769 = vadd.f32 %v767, %v768
    %v770 = vsel %vm103, %v750, 0.0
    %v771 = vrot.slane %v770, 4
    %v772 = vadd.f32 %v770, %v771
    %v773 = vrot.slane %v772, 2
    %v774 = vadd.f32 %v772, %v773
    %v775 = vrot.slane %v774, 1
    %v776 = vadd.f32 %v774, %v775
    %v777 = vsel %vm103, %v751, 0.0
    %v778 = vrot.slane %v777, 4
    %v779 = vadd.f32 %v777, %v778
    %v780 = vrot.slane %v779, 2
    %v781 = vadd.f32 %v779, %v780
    %v782 = vrot.slane %v781, 1
    %v783 = vadd.f32 %v781, %v782
    %v784 = vsel %vm103, %v752, 0.0
    %v785 = vrot.slane %v784, 4
    %v786 = vadd.f32 %v784, %v785
    %v787 = vrot.slane %v786, 2
    %v788 = vadd.f32 %v786, %v787
    %v789 = vrot.slane %v788, 1
    %v790 = vadd.f32 %v788, %v789
    %v791 = vsel %vm103, %v753, 0.0
    %v792 = vrot.slane %v791, 4
    %v793 = vadd.f32 %v791, %v792
    %v794 = vrot.slane %v793, 2
    %v795 = vadd.f32 %v793, %v794
    %v796 = vrot.slane %v795, 1
    %v797 = vadd.f32 %v795, %v796
    %v798 = vsel %vm103, %v754, 0.0
    %v799 = vrot.slane %v798, 4
    %v800 = vadd.f32 %v798, %v799
    %v801 = vrot.slane %v800, 2
    %v802 = vadd.f32 %v800, %v801
    %v803 = vrot.slane %v802, 1
    %v804 = vadd.f32 %v802, %v803
    %v805 = vsel %vm103, %v755, 0.0
    %v806 = vrot.slane %v805, 4
    %v807 = vadd.f32 %v805, %v806
    %v808 = vrot.slane %v807, 2
    %v809 = vadd.f32 %v807, %v808
    %v810 = vrot.slane %v809, 1
    %v811 = vadd.f32 %v809, %v810
    %v820 = vsel %vm499, %v769, %v762
    %v821 = vsel %vm501, %v776, %v820
    %v822 = vsel %vm503, %v783, %v821
    %v823 = vsel %vm505, %v790, %v822
    %v824 = vsel %vm507, %v797, %v823
    %v825 = vsel %vm509, %v804, %v824
    %v826 = vsel %vm511, %v811, %v825
    %827 = vrot.lane.b32.xlu0 %v826, 16
    %v828 = vpop.permute.xlu0 %827
    %vm830 = vcmask 130048
    %v831 = vsel %vm830, %v73, %v828
    %vm832 = vcmask 392192
    %v834 = vsel %vm832, %v831, 0
    %836 = vmatprep.subr.mxu0 0.0
    %837 = vmatpush1.msra.mxu0 %v82
    %838 = vmatprep.subr.mxu0 0.0
    %839 = vmatpush1.msra.mxu0 %v83
    %840 = vmatprep.subr.mxu0 0.0
    %841 = vmatpush1.msra.mxu0 %v84
    %842 = vmatprep.subr.mxu0 0.0
    %843 = vmatpush1.msra.mxu0 %v85
    %844 = vmatprep.subr.mxu0 0.0
    %845 = vmatpush1.msra.mxu0 %v86
    %846 = vmatprep.subr.mxu0 0.0
    %847 = vmatpush1.msra.mxu0 %v87
    %848 = vmatprep.subr.mxu0 0.0
    %849 = vmatpush1.msra.mxu0 0.0
    %850 = vmatprep.subr.mxu0 0.0
    %851 = vmatpush1.msra.mxu0 0.0
    %852 = vmatprep.subr.mxu0 0.0
    %853 = vmatpush1.msra.mxu0 0.0
    %854 = vmatprep.subr.mxu0 0.0
    %855 = vmatpush1.msra.mxu0 0.0
    %856 = vmatprep.subr.mxu0 0.0
    %857 = vmatpush1.msra.mxu0 0.0
    %858 = vmatprep.subr.mxu0 0.0
    %859 = vmatpush1.msra.mxu0 0.0
    %860 = vmatprep.subr.mxu0 0.0
    %861 = vmatpush1.msra.mxu0 0.0
    %862 = vmatprep.subr.mxu0 0.0
    %863 = vmatpush1.msra.mxu0 0.0
    %864 = vmatprep.subr.mxu0 0.0
    %865 = vmatpush1.msra.mxu0 0.0
    %866 = vmatprep.subr.mxu0 0.0
    %867 = vmatpush1.msra.mxu0 0.0
    %868 = vmatprep.subr.mxu0 0.0
    %869 = vmatpush1.msra.mxu0 0.0
    %870 = vmatprep.subr.mxu0 0.0
    %871 = vmatpush1.msra.mxu0 0.0
    %872 = vmatprep.subr.mxu0 0.0
    %873 = vmatpush1.msra.mxu0 0.0
    %874 = vmatprep.subr.mxu0 0.0
    %875 = vmatpush1.msra.mxu0 0.0
    %876 = vmatprep.subr.mxu0 0.0
    %877 = vmatpush1.msra.mxu0 0.0
    %878 = vmatprep.subr.mxu0 0.0
    %879 = vmatpush1.msra.mxu0 0.0
    %880 = vmatprep.subr.mxu0 0.0
    %881 = vmatpush1.msra.mxu0 0.0
    %882 = vmatprep.subr.mxu0 0.0
    %883 = vmatpush1.msra.mxu0 0.0
    %884 = vmatprep.subr.mxu0 0.0
    %885 = vmatpush1.msra.mxu0 0.0
    %886 = vmatprep.subr.mxu0 0.0
    %887 = vmatpush1.msra.mxu0 0.0
    %888 = vmatprep.subr.mxu0 0.0
    %889 = vmatpush1.msra.mxu0 0.0
    %890 = vmatprep.subr.mxu0 0.0
    %891 = vmatpush1.msra.mxu0 0.0
    %892 = vmatprep.subr.mxu0 0.0
    %893 = vmatpush1.msra.mxu0 0.0
    %894 = vmatprep.subr.mxu0 0.0
    %895 = vmatpush1.msra.mxu0 0.0
    %896 = vmatprep.subr.mxu0 0.0
    %897 = vmatpush1.msra.mxu0 0.0
    %898 = vmatprep.subr.mxu0 0.0
    %899 = vmatpush1.msra.mxu0 0.0
    %900 = vmatprep.mubr.f32.mxu0 0.0
    %901 = vmatmul.mubr.f32.gmra.mrb[0].mxu0 %v834
    %v902 = vpop.f32.mrb[0].mxu0
    %v903 = vadd.f32 %v99, %v902
    %v904 = vpop.f32.mrb[0].mxu0
    %905 = vdwg.mxu0
    %907 = vrot.lane.b32.xlu0 %v181, 96
    %v908 = vpop.permute.xlu0 %907
    %v910 = vadd.f32 %v903, %v908
    %v911 = vxor.u32 %v910, 2147483648
    %v912 = vmul.f32 %v911, 1.442695
    %v913 = vpow.pop %v912
    %v914 = vadd.f32 %v913, 1.0
    %v915 = vrcp.pop %v914
    %v916 = vmul.f32 1.0, %v915
    %917 = vrot.lane.b32.xlu0 %v181, 32
    %v918 = vpop.permute.xlu0 %917
    %v920 = vmul.f32 %v916, %v918
    %922 = vrot.lane.b32.xlu0 %v920, 64
    %v923 = vpop.permute.xlu0 %922
    %v925 = vadd.f32 %v903, %v923
    %v926 = vtanh.pop %v925
    %v927 = vsub.f32 1.0, %v916
    %929 = vrot.lane.b32.xlu0 %v926, 96
    %v930 = vpop.permute.xlu0 %929
    %v932 = vmul.f32 %v927, %v930
    %933 = vrot.lane.b32.xlu0 %v72, 32
    %v934 = vpop.permute.xlu0 %933
    %v936 = vmul.f32 %v916, %v934
    %v937 = vadd.f32 %v932, %v936
    %939 = vrot.lane.b32.xlu0 %v937, 96
    %v940 = vpop.permute.xlu0 %939
    %942 = vrot.lane.b32.xlu0 %v826, 32
    %v943 = vpop.permute.xlu0 %942
    %946 = vrot.lane.b32.xlu0 %v73, 64
    %v947 = vpop.permute.xlu0 %946
    %v949 = vsel %vm103, %v940, %v943
    %vm950 = vcmask 523264
    %v951 = vsel %vm950, %v949, %v947
    %vm952 = vcmask 654336
    %v954 = vsel %vm952, %v951, 0
    %956 = vmatprep.subr.mxu0 0.0
    %957 = vmatpush1.msra.mxu0 %v88
    %958 = vmatprep.subr.mxu0 0.0
    %959 = vmatpush1.msra.mxu0 %v89
    %960 = vmatprep.subr.mxu0 0.0
    %961 = vmatpush1.msra.mxu0 %v90
    %962 = vmatprep.subr.mxu0 0.0
    %963 = vmatpush1.msra.mxu0 %v91
    %964 = vmatprep.subr.mxu0 0.0
    %965 = vmatpush1.msra.mxu0 %v92
    %966 = vmatprep.subr.mxu0 0.0
    %967 = vmatpush1.msra.mxu0 %v93
    %968 = vmatprep.subr.mxu0 0.0
    %969 = vmatpush1.msra.mxu0 %v94
    %970 = vmatprep.subr.mxu0 0.0
    %971 = vmatpush1.msra.mxu0 %v95
    %972 = vmatprep.subr.mxu0 0.0
    %973 = vmatpush1.msra.mxu0 %v96
    %974 = vmatprep.subr.mxu0 0.0
    %975 = vmatpush1.msra.mxu0 %v97
    %976 = vmatprep.subr.mxu0 0.0
    %977 = vmatpush1.msra.mxu0 0.0
    %978 = vmatprep.subr.mxu0 0.0
    %979 = vmatpush1.msra.mxu0 0.0
    %980 = vmatprep.subr.mxu0 0.0
    %981 = vmatpush1.msra.mxu0 0.0
    %982 = vmatprep.subr.mxu0 0.0
    %983 = vmatpush1.msra.mxu0 0.0
    %984 = vmatprep.subr.mxu0 0.0
    %985 = vmatpush1.msra.mxu0 0.0
    %986 = vmatprep.subr.mxu0 0.0
    %987 = vmatpush1.msra.mxu0 0.0
    %988 = vmatprep.subr.mxu0 0.0
    %989 = vmatpush1.msra.mxu0 0.0
    %990 = vmatprep.subr.mxu0 0.0
    %991 = vmatpush1.msra.mxu0 0.0
    %992 = vmatprep.subr.mxu0 0.0
    %993 = vmatpush1.msra.mxu0 0.0
    %994 = vmatprep.subr.mxu0 0.0
    %995 = vmatpush1.msra.mxu0 0.0
    %996 = vmatprep.subr.mxu0 0.0
    %997 = vmatpush1.msra.mxu0 0.0
    %998 = vmatprep.subr.mxu0 0.0
    %999 = vmatpush1.msra.mxu0 0.0
    %1000 = vmatprep.subr.mxu0 0.0
    %1001 = vmatpush1.msra.mxu0 0.0
    %1002 = vmatprep.subr.mxu0 0.0
    %1003 = vmatpush1.msra.mxu0 0.0
    %1004 = vmatprep.subr.mxu0 0.0
    %1005 = vmatpush1.msra.mxu0 0.0
    %1006 = vmatprep.subr.mxu0 0.0
    %1007 = vmatpush1.msra.mxu0 0.0
    %1008 = vmatprep.subr.mxu0 0.0
    %1009 = vmatpush1.msra.mxu0 0.0
    %1010 = vmatprep.subr.mxu0 0.0
    %1011 = vmatpush1.msra.mxu0 0.0
    %1012 = vmatprep.subr.mxu0 0.0
    %1013 = vmatpush1.msra.mxu0 0.0
    %1014 = vmatprep.subr.mxu0 0.0
    %1015 = vmatpush1.msra.mxu0 0.0
    %1016 = vmatprep.subr.mxu0 0.0
    %1017 = vmatpush1.msra.mxu0 0.0
    %1018 = vmatprep.subr.mxu0 0.0
    %1019 = vmatpush1.msra.mxu0 0.0
    %1020 = vmatprep.mubr.f32.mxu0 0.0
    %1021 = vmatmul.mubr.f32.gmra.mrb[0].mxu0 %v954
    %v1022 = vpop.f32.mrb[0].mxu0
    %v1023 = vadd.f32 %v101, %v1022
    %v1024 = vpop.f32.mrb[0].mxu0
    %1025 = vdwg.mxu0
    %1026 = vst.msk [vmem:[#allocation2] sm:$0xff] %vm103, %v940
    %1027 = vrot.lane.b32.xlu0 %v937, 32
    %v1028 = vpop.permute.xlu0 %1027
    %v1030 = vadd.s32 %v466, 4294967200
    %v1031 = vlaneseq
    %v1032 = vshrl.u32 %v1031, 7
    %v1033 = vsub.s32 %v1030, %v1032
    %v1034 = vrot.slane %v711, %v1033
    %v1035 = vlaneseq
    %v1036 = vshrl.u32 %v1035, 7
    %v1037 = vsub.s32 %v1030, %v1036
    %v1038 = vrot.slane %v716, %v1037
    %v1039 = vlaneseq
    %v1040 = vshrl.u32 %v1039, 7
    %v1041 = vsub.s32 %v1030, %v1040
    %v1042 = vrot.slane %v721, %v1041
    %v1043 = vlaneseq
    %v1044 = vshrl.u32 %v1043, 7
    %v1045 = vsub.s32 %v1030, %v1044
    %v1046 = vrot.slane %v726, %v1045
    %v1047 = vlaneseq
    %v1048 = vshrl.u32 %v1047, 7
    %v1049 = vsub.s32 %v1030, %v1048
    %v1050 = vrot.slane %v731, %v1049
    %v1051 = vlaneseq
    %v1052 = vshrl.u32 %v1051, 7
    %v1053 = vsub.s32 %v1030, %v1052
    %v1054 = vrot.slane %v736, %v1053
    %v1055 = vlaneseq
    %v1056 = vshrl.u32 %v1055, 7
    %v1057 = vsub.s32 %v1030, %v1056
    %v1058 = vrot.slane %v741, %v1057
    %v1059 = vlaneseq
    %v1060 = vshrl.u32 %v1059, 7
    %v1061 = vsub.s32 %v1030, %v1060
    %v1062 = vrot.slane %v746, %v1061
    %v1063 = vsel %vm499, %v1038, %v1034
    %v1064 = vsel %vm501, %v1042, %v1063
    %v1065 = vsel %vm503, %v1046, %v1064
    %v1066 = vsel %vm505, %v1050, %v1065
    %v1067 = vsel %vm507, %v1054, %v1066
    %v1068 = vsel %vm509, %v1058, %v1067
    %v1069 = vsel %vm511, %v1062, %v1068
    %v1071 = vsel %vm950, %v1023, %v1028
    %vm1072 = vcmask 785408
    %v1073 = vsel %vm1072, %v1071, %v1069
    %vm1074 = vcmask 850944
    %v1075 = vsel %vm1074, %v1073, 0.0
    %1076 = vst [vmem:[#allocation9] sm:$0xff] %v1075
    // Predicated region
    $region34: #{tpu_custom_call.1} parent=1 // pred_check
      _
    $region35: #{tpu_custom_call.1} parent=1 // pred_check_branch
      %1078 = sbr.rel (0) target = $region37
    $region36: #{tpu_custom_call.1} parent=1 // pred_region
      %s1080 = ssub.s32 128, 128
      %1081 = vsyncadd [#allocation5], %s1080
      %s1083 = sshll.u32 [#allocation9], 4
      %s1084 = int_to_ptr.vmem [resolvable:$true] %s1083
      %1086 = dma.vmem_to_hbm [thread:$0]  %s1084, 128, %s4, [#allocation5]
    $region37: #{tpu_custom_call.1} parent=1 // pred_fallthru
      _
    // Predicated region
    $region38: #{tpu_custom_call.1} parent=1 // pred_check
      _
    $region39: #{tpu_custom_call.1} parent=1 // pred_check_branch
      %1088 = sbr.rel (0) target = $region41
    $region40: #{tpu_custom_call.1} parent=1 // pred_region
      %1089 = dma.done [#allocation5], 128
    $region41: #{tpu_custom_call.1} parent=1 // pred_fallthru
      _
    %1090 = vsyncpa [#allocation4], 1
    %1091 = vsyncpa [#allocation7], 1
    %1092 = vsyncpa [#allocation5], 1

</llo_original>
